<compile_context>
chip_gen: v7x
topology: tpu7x:2x2x1
jax: 0.10.0
libtpu: 0.0.40
codegen_flags: <defaults>
</compile_context>

<pallas_src>
import functools

import jax
import jax.numpy as jnp
from jax.experimental import pallas as pl
from jax.experimental.pallas import tpu as pltpu


def _round_up(n: int, m: int) -> int:
    return ((n + m - 1) // m) * m


def _user_tower_kernel(x_ref, w1_ref, b1_ref, w2_ref, b2_ref, o_ref):
    """Fused MLP: (x @ W1 + b1) -> ReLU -> [Dropout = identity] -> (@ W2 + b2)."""
    x = x_ref[...].astype(jnp.bfloat16)              # f32 in HBM, bf16 into the MXU

    h = jnp.dot(x, w1_ref[...], preferred_element_type=jnp.float32)
    h = h + b1_ref[...]                              # f32 bias add
    h = jnp.maximum(h, 0.0)                          # ReLU in f32
    # Dropout(p) in eval mode == identity.

    out = jnp.dot(h.astype(jnp.bfloat16), w2_ref[...],
                  preferred_element_type=jnp.float32)
    out = out + b2_ref[...]
    o_ref[...] = out.astype(o_ref.dtype)


def prepare_params(params):
    """One-time layout prep (run once; NOT per forward call).

    Input params are in PyTorch nn.Linear layout: w1 (128, D_in), b1 (128,),
    w2 (E, 128), b2 (E,).  Output is (in, out) bf16 weights + (1, out) f32 biases.
    """
    return {
        "w1": params["w1"].T.astype(jnp.bfloat16),            # (D_in, 128)
        "b1": params["b1"].reshape(1, -1).astype(jnp.float32),  # (1, 128)
        "w2": params["w2"].T.astype(jnp.bfloat16),            # (128, E)
        "b2": params["b2"].reshape(1, -1).astype(jnp.float32),  # (1, E)
    }


@functools.partial(jax.jit, static_argnames=("block_b",))
def user_tower_v1(x, prepared, block_b=1024):
    """x: (B, user_input_size) float32.  prepared: output of prepare_params()."""
    B, d_in = x.shape
    w1, b1 = prepared["w1"], prepared["b1"]
    w2, b2 = prepared["w2"], prepared["b2"]
    hidden = w1.shape[1]                              # 128 (lane-aligned)
    E = w2.shape[1]

    # Batch tile: as large as possible (VMEM is never the limiter here),
    # 16-aligned for bf16 sublane packing, never larger than needed for B, and
    # capped so the parallel batch grid has >= 2 steps when B allows it (v7x
    # has 2 TensorCores sharing the parallel axis; grid=(1,) idles one).
    bb = min(block_b, _round_up(B, 8), max(16, _round_up(pl.cdiv(B, 2), 16)))
    grid = (pl.cdiv(B, bb),)

    def _x_map(i):
        return (i, 0)

    def _rep_map(i):  # weights/biases are resident (constant block index)
        return (0, 0)

    flops = 2 * B * (d_in * hidden + hidden * E)
    bytes_accessed = (
        B * d_in * 4                     # x (f32, unpadded)
        + d_in * hidden * 2              # w1 (bf16)
        + hidden * E * 2                 # w2 (bf16)
        + (hidden + E) * 4               # biases (f32)
        + B * E * 4                      # out (f32, unpadded)
    )

    out = pl.pallas_call(
        _user_tower_kernel,
        out_shape=jax.ShapeDtypeStruct((B, E), jnp.float32),
        grid_spec=pltpu.PrefetchScalarGridSpec(
            num_scalar_prefetch=0,
            grid=grid,
            in_specs=[
                pl.BlockSpec((bb, d_in), _x_map),       # last dim == full array dim
                pl.BlockSpec((d_in, hidden), _rep_map),
                pl.BlockSpec((1, hidden), _rep_map),
                pl.BlockSpec((hidden, E), _rep_map),    # last dim == full array dim
                pl.BlockSpec((1, E), _rep_map),
            ],
            out_specs=pl.BlockSpec((bb, E), _x_map),    # unpadded output, no slice pass
        ),
        compiler_params=pltpu.CompilerParams(
            dimension_semantics=("parallel",)),
        cost_estimate=pl.CostEstimate(
            flops=flops, transcendentals=0, bytes_accessed=bytes_accessed),
    )(x, w1, b1, w2, b2)

    return out


def init_params(key, user_input_size, embedding_size, hidden=128):
    """Deterministic synthetic parameters in PyTorch nn.Linear layout (out, in)."""
    ks = jax.random.split(key, 4)

    def linear(kw, kb, d_in, d_out):
        scale = 1.0 / jnp.sqrt(jnp.float32(d_in))
        w = jax.random.uniform(kw, (d_out, d_in), jnp.float32, -scale, scale)
        b = jax.random.uniform(kb, (d_out,), jnp.float32, -scale, scale)
        return w, b

    w1, b1 = linear(ks[0], ks[1], user_input_size, hidden)
    w2, b2 = linear(ks[2], ks[3], hidden, embedding_size)
    return {"w1": w1, "b1": b1, "w2": w2, "b2": b2}


def _reference(x, params):
    """Reference with the same mixed precision as the kernel (bf16 operands, f32 acc)."""
    w1 = params["w1"].T.astype(jnp.bfloat16)
    w2 = params["w2"].T.astype(jnp.bfloat16)
    h = jnp.dot(x.astype(jnp.bfloat16), w1,
                preferred_element_type=jnp.float32) + params["b1"]
    h = jnp.maximum(h, 0.0)
    return jnp.dot(h.astype(jnp.bfloat16), w2,
                   preferred_element_type=jnp.float32) + params["b2"]


if __name__ == "__main__":
    user_input_size = 32
    embedding_size = 32
    batch = 8

    key = jax.random.PRNGKey(0)
    kx, kp = jax.random.split(key)
    x = jax.random.normal(kx, (batch, user_input_size), jnp.float32)
    params = init_params(kp, user_input_size, embedding_size)

    prepared = prepare_params(params)                 # one-time layout prep
    out = user_tower_v1(x, prepared)
    out = jax.block_until_ready(out)

    ref = _reference(x, params)
    assert out.shape == (batch, embedding_size)
    assert jnp.allclose(out, ref, atol=2e-3, rtol=2e-3), "mismatch vs reference"

    print("KERNEL_OK")
</pallas_src>

<mosaic_0001>
module attributes {stable_mosaic.version = 11 : i64} {
  func.func @_user_tower_kernel(%arg0: i32, %arg1: memref<8x32xf32, #tpu.memory_space<vmem>>, %arg2: memref<32x128xbf16, #tpu.memory_space<vmem>>, %arg3: memref<1x128xf32, #tpu.memory_space<vmem>>, %arg4: memref<128x32xbf16, #tpu.memory_space<vmem>>, %arg5: memref<1x32xf32, #tpu.memory_space<vmem>>, %arg6: memref<8x32xf32, #tpu.memory_space<vmem>>) attributes {dimension_semantics = [#tpu.dimension_semantics<parallel>], iteration_bounds = array<i64: 1>, scalar_prefetch = 0 : i64, scratch_operands = 0 : i64, tpu.core_type = #tpu.core_type<tc>, window_params = [{transform_indices = @transform_0, window_bounds = array<i64: 8, 32>}, {pipeline_mode = #tpu.pipeline_mode<synchronous>, transform_indices = @transform_1, window_bounds = array<i64: 32, 128>}, {pipeline_mode = #tpu.pipeline_mode<synchronous>, transform_indices = @transform_2, window_bounds = array<i64: 1, 128>}, {pipeline_mode = #tpu.pipeline_mode<synchronous>, transform_indices = @transform_3, window_bounds = array<i64: 128, 32>}, {pipeline_mode = #tpu.pipeline_mode<synchronous>, transform_indices = @transform_4, window_bounds = array<i64: 1, 32>}, {transform_indices = @transform_5, window_bounds = array<i64: 8, 32>}]} {
    %c0 = arith.constant 0 : index
    %c0_0 = arith.constant 0 : index
    %0 = vector.load %arg1[%c0, %c0_0] : memref<8x32xf32, #tpu.memory_space<vmem>>, vector<8x32xf32>
    %1 = arith.truncf %0 : vector<8x32xf32> to vector<8x32xbf16>
    %c0_1 = arith.constant 0 : index
    %c0_2 = arith.constant 0 : index
    %2 = vector.load %arg2[%c0_1, %c0_2] : memref<32x128xbf16, #tpu.memory_space<vmem>>, vector<32x128xbf16>
    %cst = arith.constant dense<0.000000e+00> : vector<8x128xf32>
    %3 = tpu.matmul %1, %2, %cst {dimension_numbers = #tpu.dot_dimension_numbers<[1], [0], [0], [1], [0, 0, 1, 1], [], []>} : vector<8x32xbf16>, vector<32x128xbf16>, vector<8x128xf32> -> vector<8x128xf32>
    %c0_3 = arith.constant 0 : index
    %c0_4 = arith.constant 0 : index
    %4 = vector.load %arg3[%c0_3, %c0_4] : memref<1x128xf32, #tpu.memory_space<vmem>>, vector<1x128xf32>
    %5 = vector.broadcast %4 : vector<1x128xf32> to vector<8x128xf32>
    %6 = arith.addf %3, %5 : vector<8x128xf32>
    %cst_5 = arith.constant 0.000000e+00 : f32
    %7 = vector.broadcast %cst_5 : f32 to vector<8x128xf32>
    %8 = arith.maximumf %6, %7 : vector<8x128xf32>
    %9 = arith.truncf %8 : vector<8x128xf32> to vector<8x128xbf16>
    %c0_6 = arith.constant 0 : index
    %c0_7 = arith.constant 0 : index
    %10 = vector.load %arg4[%c0_6, %c0_7] : memref<128x32xbf16, #tpu.memory_space<vmem>>, vector<128x32xbf16>
    %cst_8 = arith.constant dense<0.000000e+00> : vector<8x32xf32>
    %11 = tpu.matmul %9, %10, %cst_8 {dimension_numbers = #tpu.dot_dimension_numbers<[1], [0], [0], [1], [0, 0, 1, 1], [], []>} : vector<8x128xbf16>, vector<128x32xbf16>, vector<8x32xf32> -> vector<8x32xf32>
    %c0_9 = arith.constant 0 : index
    %c0_10 = arith.constant 0 : index
    %12 = vector.load %arg5[%c0_9, %c0_10] : memref<1x32xf32, #tpu.memory_space<vmem>>, vector<1x32xf32>
    %13 = vector.broadcast %12 : vector<1x32xf32> to vector<8x32xf32>
    %14 = arith.addf %11, %13 : vector<8x32xf32>
    %c0_11 = arith.constant 0 : index
    %c0_12 = arith.constant 0 : index
    %15 = vector.load %arg6[%c0_11, %c0_12] : memref<8x32xf32, #tpu.memory_space<vmem>>, vector<8x32xf32>
    tpu.vector_store %arg6[%c0_11, %c0_12], %14 {strides = array<i32>} : memref<8x32xf32, #tpu.memory_space<vmem>>, vector<8x32xf32>,
    return
  }
  func.func @transform_0(%arg0: i32) -> (i32, i32) {
    %c0_i32 = arith.constant 0 : i32
    %c0_i32_0 = arith.constant 0 : i32
    return %arg0, %c0_i32 : i32, i32
  }
  func.func @transform_1(%arg0: i32) -> (i32, i32) {
    %c0_i32 = arith.constant 0 : i32
    %c0_i32_0 = arith.constant 0 : i32
    %c0_i32_1 = arith.constant 0 : i32
    return %c0_i32, %c0_i32_0 : i32, i32
  }
  func.func @transform_2(%arg0: i32) -> (i32, i32) {
    %c0_i32 = arith.constant 0 : i32
    %c0_i32_0 = arith.constant 0 : i32
    %c0_i32_1 = arith.constant 0 : i32
    return %c0_i32, %c0_i32_0 : i32, i32
  }
  func.func @transform_3(%arg0: i32) -> (i32, i32) {
    %c0_i32 = arith.constant 0 : i32
    %c0_i32_0 = arith.constant 0 : i32
    %c0_i32_1 = arith.constant 0 : i32
    return %c0_i32, %c0_i32_0 : i32, i32
  }
  func.func @transform_4(%arg0: i32) -> (i32, i32) {
    %c0_i32 = arith.constant 0 : i32
    %c0_i32_0 = arith.constant 0 : i32
    %c0_i32_1 = arith.constant 0 : i32
    return %c0_i32, %c0_i32_0 : i32, i32
  }
  func.func @transform_5(%arg0: i32) -> (i32, i32) {
    %c0_i32 = arith.constant 0 : i32
    %c0_i32_0 = arith.constant 0 : i32
    return %arg0, %c0_i32 : i32, i32
  }
}

</mosaic_0001>

<llo_original>
// kernel: user_tower_v1.1
$region0: #{user_tower_v1.1}
  #allocation0 [shape = 'u32[]', space=smem, size = 0x4, offset = 0x4, fixed_abs, tag = 'smem constant byte address 0x4 - core index']
  #allocation1 [shape = 'u32[144,128]{1,0:T(1,128)}', space=vmem, size = 0x12000, scoped, tag = 'internal scratch']
  %s0 = inlined_call_operand.vmem [shape: f32[8,32], index: 0, kind: input, shape index: {}]
  %s1 = inlined_call_operand.vmem [shape: bf16[32,128], index: 1, kind: input, shape index: {}]
  %s2 = inlined_call_operand.vmem [shape: f32[1,128], index: 2, kind: input, shape index: {}]
  %s3 = inlined_call_operand.vmem [shape: bf16[128,32], index: 3, kind: input, shape index: {}]
  %s4 = inlined_call_operand.vmem [shape: f32[1,32], index: 4, kind: input, shape index: {}]
  %s5 = inlined_call_operand.hbm [shape: f32[8,32], index: 5, kind: output, shape index: {}]
  %s6 = sld [smem:[#allocation0]]
  $region30: #{user_tower_v1.1} parent=0
    _
  %s8 = ssub.s32 1, %s6
  %s9 = scalar_select 0, %s8, %s6
  $region1: #{user_tower_v1.1} parent=0
    #allocation2 [shape = 'u8[4096]{0}', space=vmem, size = 0x1000, scoped, tag = 'output window, operand 0, single buffered']
    #allocation3 [shape = 's32[1]{0}', space=sflag, size = 0x4, scoped, tag = 'scoped memory for user_tower_v1.1']
    %10 = vsyncpa [#allocation3], 0
    // Predicated region
    $region2: #{user_tower_v1.1} parent=1 // pred_check
      _
    $region3: #{user_tower_v1.1} parent=1 // pred_check_branch
      %12 = sbr.rel (0) target = $region5
    $region4: #{user_tower_v1.1} parent=1 // pred_region
      _
    $region5: #{user_tower_v1.1} parent=1 // pred_fallthru
      _
    // Predicated region
    $region6: #{user_tower_v1.1} parent=1 // pred_check
      _
    $region7: #{user_tower_v1.1} parent=1 // pred_check_branch
      %14 = sbr.rel (0) target = $region9
    $region8: #{user_tower_v1.1} parent=1 // pred_region
      _
    $region9: #{user_tower_v1.1} parent=1 // pred_fallthru
      _
    // Predicated region
    $region10: #{user_tower_v1.1} parent=1 // pred_check
      _
    $region11: #{user_tower_v1.1} parent=1 // pred_check_branch
      %16 = sbr.rel (0) target = $region13
    $region12: #{user_tower_v1.1} parent=1 // pred_region
      _
    $region13: #{user_tower_v1.1} parent=1 // pred_fallthru
      _
    // Predicated region
    $region14: #{user_tower_v1.1} parent=1 // pred_check
      _
    $region15: #{user_tower_v1.1} parent=1 // pred_check_branch
      %18 = sbr.rel (0) target = $region17
    $region16: #{user_tower_v1.1} parent=1 // pred_region
      _
    $region17: #{user_tower_v1.1} parent=1 // pred_fallthru
      _
    // Predicated region
    $region18: #{user_tower_v1.1} parent=1 // pred_check
      _
    $region19: #{user_tower_v1.1} parent=1 // pred_check_branch
      %20 = sbr.rel (0) target = $region21
    $region20: #{user_tower_v1.1} parent=1 // pred_region
      _
    $region21: #{user_tower_v1.1} parent=1 // pred_fallthru
      _
    %v22 = vld [vmem:[%s0] sm:$0xff]
    %v23 = vpack.c.bf16 %v22, %v22
    %v24 = vld [vmem:[%s1] sm:$0xf]
    %v25 = vld [vmem:[%s1 + $0x4] sm:$0xf]
    %v26 = vld [vmem:[%s1 + $0x8] sm:$0xf]
    %v27 = vld [vmem:[%s1 + $0xc] sm:$0xf]
    %v28 = vld [vmem:[%s2] sm:$0x1]
    %v30 = vlaneseq
    %v31 = vshrl.u32 %v30, 7
    %v32 = vsub.s32 0, %v31
    %v33 = vrot.slane %v28, %v32
    %v39 = vunpack.c.l.b16 %v24
    %v40 = vunpack.c.l.b16 %v25
    %v41 = vunpack.c.l.b16 %v26
    %v42 = vunpack.c.l.b16 %v27
    %v43 = vpack.c.b16 %v40, %v39
    %v44 = vpack.c.b16 %v42, %v41
    %vm47 = vcmask 261120
    %v49 = vsel %vm47, %v23, 0
    %51 = vmatprep.subr.bf16.mxu0 0
    %52 = vmatpush1.bf16.msra.mxu0 %v43
    %53 = vmatprep.subr.bf16.mxu0 0
    %54 = vmatpush1.bf16.msra.mxu0 %v44
    %55 = vmatprep.subr.bf16.mxu0 0
    %56 = vmatpush1.bf16.msra.mxu0 0
    %57 = vmatprep.subr.bf16.mxu0 0
    %58 = vmatpush1.bf16.msra.mxu0 0
    %59 = vmatprep.subr.bf16.mxu0 0
    %60 = vmatpush1.bf16.msra.mxu0 0
    %61 = vmatprep.subr.bf16.mxu0 0
    %62 = vmatpush1.bf16.msra.mxu0 0
    %63 = vmatprep.subr.bf16.mxu0 0
    %64 = vmatpush1.bf16.msra.mxu0 0
    %65 = vmatprep.subr.bf16.mxu0 0
    %66 = vmatpush1.bf16.msra.mxu0 0
    %67 = vmatprep.subr.bf16.mxu0 0
    %68 = vmatpush1.bf16.msra.mxu0 0
    %69 = vmatprep.subr.bf16.mxu0 0
    %70 = vmatpush1.bf16.msra.mxu0 0
    %71 = vmatprep.subr.bf16.mxu0 0
    %72 = vmatpush1.bf16.msra.mxu0 0
    %73 = vmatprep.subr.bf16.mxu0 0
    %74 = vmatpush1.bf16.msra.mxu0 0
    %75 = vmatprep.subr.bf16.mxu0 0
    %76 = vmatpush1.bf16.msra.mxu0 0
    %77 = vmatprep.subr.bf16.mxu0 0
    %78 = vmatpush1.bf16.msra.mxu0 0
    %79 = vmatprep.subr.bf16.mxu0 0
    %80 = vmatpush1.bf16.msra.mxu0 0
    %81 = vmatprep.subr.bf16.mxu0 0
    %82 = vmatpush1.bf16.msra.mxu0 0
    %83 = vmatprep.mubr.bf16.mxu0 0
    %84 = vmatmul.mubr.bf16.gmra.mrb[0].mxu0 %v49
    %v85 = vpop.f32.mrb[0].mxu0
    %v86 = vadd.f32 %v33, %v85
    %v87 = vpop.f32.mrb[0].mxu0
    %v88 = vpop.f32.mrb[0].mxu0
    %v89 = vpop.f32.mrb[0].mxu0
    %90 = vdwg.mxu0
    %v91 = vmax.f32 %v86, 0.0
    %v92 = vpack.c.bf16 %v91, %v91
    %v93 = vld [vmem:[%s3] sm:$0xf]
    %v94 = vld [vmem:[%s3 + $0x4] sm:$0xf]
    %v95 = vld [vmem:[%s3 + $0x8] sm:$0xf]
    %v96 = vld [vmem:[%s3 + $0xc] sm:$0xf]
    %v97 = vld [vmem:[%s3 + $0x10] sm:$0xf]
    %v98 = vld [vmem:[%s3 + $0x14] sm:$0xf]
    %v99 = vld [vmem:[%s3 + $0x18] sm:$0xf]
    %v100 = vld [vmem:[%s3 + $0x1c] sm:$0xf]
    %v101 = vld [vmem:[%s3 + $0x20] sm:$0xf]
    %v102 = vld [vmem:[%s3 + $0x24] sm:$0xf]
    %v103 = vld [vmem:[%s3 + $0x28] sm:$0xf]
    %v104 = vld [vmem:[%s3 + $0x2c] sm:$0xf]
    %v105 = vld [vmem:[%s3 + $0x30] sm:$0xf]
    %v106 = vld [vmem:[%s3 + $0x34] sm:$0xf]
    %v107 = vld [vmem:[%s3 + $0x38] sm:$0xf]
    %v108 = vld [vmem:[%s3 + $0x3c] sm:$0xf]
    %v109 = vld [vmem:[%s4] sm:$0x1]
    %v111 = vlaneseq
    %v112 = vshrl.u32 %v111, 7
    %v113 = vsub.s32 0, %v112
    %v114 = vrot.slane %v109, %v113
    %v132 = vunpack.c.l.b16 %v93
    %v133 = vunpack.c.l.b16 %v94
    %v134 = vunpack.c.l.b16 %v95
    %v135 = vunpack.c.l.b16 %v96
    %v136 = vunpack.c.l.b16 %v97
    %v137 = vunpack.c.l.b16 %v98
    %v138 = vunpack.c.l.b16 %v99
    %v139 = vunpack.c.l.b16 %v100
    %v140 = vunpack.c.l.b16 %v101
    %v141 = vunpack.c.l.b16 %v102
    %v142 = vunpack.c.l.b16 %v103
    %v143 = vunpack.c.l.b16 %v104
    %v144 = vunpack.c.l.b16 %v105
    %v145 = vunpack.c.l.b16 %v106
    %v146 = vunpack.c.l.b16 %v107
    %v147 = vunpack.c.l.b16 %v108
    %v148 = vpack.c.b16 %v133, %v132
    %v149 = vpack.c.b16 %v135, %v134
    %v150 = vpack.c.b16 %v137, %v136
    %v151 = vpack.c.b16 %v139, %v138
    %v152 = vpack.c.b16 %v141, %v140
    %v153 = vpack.c.b16 %v143, %v142
    %v154 = vpack.c.b16 %v145, %v144
    %v155 = vpack.c.b16 %v147, %v146
    %164 = vmatprep.subr.bf16.mxu0 0
    %165 = vmatpush1.bf16.msra.mxu0 %v148
    %166 = vmatprep.subr.bf16.mxu0 0
    %167 = vmatpush1.bf16.msra.mxu0 %v149
    %168 = vmatprep.subr.bf16.mxu0 0
    %169 = vmatpush1.bf16.msra.mxu0 %v150
    %170 = vmatprep.subr.bf16.mxu0 0
    %171 = vmatpush1.bf16.msra.mxu0 %v151
    %172 = vmatprep.subr.bf16.mxu0 0
    %173 = vmatpush1.bf16.msra.mxu0 %v152
    %174 = vmatprep.subr.bf16.mxu0 0
    %175 = vmatpush1.bf16.msra.mxu0 %v153
    %176 = vmatprep.subr.bf16.mxu0 0
    %177 = vmatpush1.bf16.msra.mxu0 %v154
    %178 = vmatprep.subr.bf16.mxu0 0
    %179 = vmatpush1.bf16.msra.mxu0 %v155
    %180 = vmatprep.subr.bf16.mxu0 0
    %181 = vmatpush1.bf16.msra.mxu0 0
    %182 = vmatprep.subr.bf16.mxu0 0
    %183 = vmatpush1.bf16.msra.mxu0 0
    %184 = vmatprep.subr.bf16.mxu0 0
    %185 = vmatpush1.bf16.msra.mxu0 0
    %186 = vmatprep.subr.bf16.mxu0 0
    %187 = vmatpush1.bf16.msra.mxu0 0
    %188 = vmatprep.subr.bf16.mxu0 0
    %189 = vmatpush1.bf16.msra.mxu0 0
    %190 = vmatprep.subr.bf16.mxu0 0
    %191 = vmatpush1.bf16.msra.mxu0 0
    %192 = vmatprep.subr.bf16.mxu0 0
    %193 = vmatpush1.bf16.msra.mxu0 0
    %194 = vmatprep.subr.bf16.mxu0 0
    %195 = vmatpush1.bf16.msra.mxu0 0
    %196 = vmatprep.mubr.bf16.mxu0 0
    %197 = vmatmul.mubr.bf16.gmra.mrb[0].mxu0 %v92
    %v198 = vpop.f32.mrb[0].mxu0
    %v199 = vadd.f32 %v114, %v198
    %v200 = vpop.f32.mrb[0].mxu0
    %v201 = vpop.f32.mrb[0].mxu0
    %v202 = vpop.f32.mrb[0].mxu0
    %203 = vdwg.mxu0
    %204 = vst.msk [vmem:[#allocation2] sm:$0xff] %vm47, %v199
    // Predicated region
    $region22: #{user_tower_v1.1} parent=1 // pred_check
      _
    $region23: #{user_tower_v1.1} parent=1 // pred_check_branch
      %206 = sbr.rel (0) target = $region25
    $region24: #{user_tower_v1.1} parent=1 // pred_region
      %s208 = ssub.s32 128, 128
      %209 = vsyncadd [#allocation3], %s208
      %s211 = sshll.u32 [#allocation2], 4
      %s212 = int_to_ptr.vmem [resolvable:$true] %s211
      %214 = dma.vmem_to_hbm [thread:$0]  %s212, 128, %s5, [#allocation3]
    $region25: #{user_tower_v1.1} parent=1 // pred_fallthru
      _
    // Predicated region
    $region26: #{user_tower_v1.1} parent=1 // pred_check
      _
    $region27: #{user_tower_v1.1} parent=1 // pred_check_branch
      %216 = sbr.rel (0) target = $region29
    $region28: #{user_tower_v1.1} parent=1 // pred_region
      %217 = dma.done [#allocation3], 128
    $region29: #{user_tower_v1.1} parent=1 // pred_fallthru
      _
    %218 = vsyncpa [#allocation3], 1

</llo_original>
